<compile_context>
chip_gen: v7x
topology: tpu7x:2x2x1
jax: 0.10.0
libtpu: 0.0.40
codegen_flags: <defaults>
</compile_context>

<pallas_src>
import jax
import jax.numpy as jnp
from jax.experimental import pallas as pl
from jax.experimental.pallas import tpu as pltpu
import numpy as np

# ---- model constants (stand-ins for project_curiosity constants C.*) ----
EMBED_DIM = 32           # C.EMBED_DIM
HIDDEN_DIM = 32          # C.HIDDEN_DIM
NUM_ACTIONS = 4          # len(C.ACTION_TOKENS)
VOCAB_SIZE = 64          # vocab_size
K_TABLE = 2 * VOCAB_SIZE + NUM_ACTIONS   # 132 real table rows
K_PAD = 256              # one-hot / table K padded to a multiple of 128
OUT_PAD = 128            # lane-dense padded logits width (>= VOCAB_SIZE)
BATCH = 8


def _fused_kernel(a_ids_ref, act_ids_ref, b_ids_ref,   # (B, 1) int32, VMEM
                  table_ref, b1_ref, w2_ref, b2_ref,    # prepped weights, VMEM
                  out_ref):                             # (B, OUT_PAD) f32, VMEM
    """one-hot(ids) @ T  (== gather+pos+fc1)  -> ReLU -> fc2 -> padded logits."""
    B = out_ref.shape[0]
    K = table_ref.shape[0]                               # 256

    # Clamp ids so a bad token can never select the wrong table region
    # (Pallas does not bounds-check; with one-hot a clamped id is still valid).
    a_col = jnp.clip(a_ids_ref[...], 0, VOCAB_SIZE - 1)                       # cols [0, V)
    act_col = jnp.clip(act_ids_ref[...], 0, NUM_ACTIONS - 1) + VOCAB_SIZE     # cols [V, V+A)
    b_col = (jnp.clip(b_ids_ref[...], 0, VOCAB_SIZE - 1)
             + VOCAB_SIZE + NUM_ACTIONS)                                      # cols [V+A, 2V+A)

    # Single vectorized one-hot build: (B, K) iota vs the three (B, 1) id vectors.
    cols = jax.lax.broadcasted_iota(jnp.int32, (B, K), 1)
    hit = (cols == a_col) | (cols == act_col) | (cols == b_col)
    onehot = jnp.where(hit, 1.0, 0.0).astype(jnp.bfloat16)                    # (B, 256) bf16

    # fc1 (embedding gathers + pos + fc1 all folded into table_ref).
    h = (jnp.dot(onehot, table_ref[...], preferred_element_type=jnp.float32)
         + b1_ref[...])                                                       # (B, H) f32
    h = jnp.maximum(h, 0.0)                                                   # ReLU (f32 VPU)

    # fc2 -> lane-dense padded concept logits (unmasked 128-wide store).
    out_ref[...] = (jnp.dot(h.astype(jnp.bfloat16), w2_ref[...],
                            preferred_element_type=jnp.float32)
                    + b2_ref[...])


def prepare_params(params):
    """One-time prep: fold pos into b1, fold embeddings+fc1 into one table, pad fc2."""
    E = EMBED_DIM
    w1 = params["fc1_w"].astype(jnp.float32)            # (3E, H), (in, out) layout
    b1 = params["fc1_b"].astype(jnp.float32)            # (1, H)
    pos = params["pos_embed"].astype(jnp.float32)       # (2, E)
    concept = params["concept_embed"].astype(jnp.float32)   # (V, E)
    action = params["action_embed"].astype(jnp.float32)     # (A, E)

    # pos is batch-invariant and fc1 is linear -> fold into the bias.
    b1_eff = (b1
              + pos[0:1, :] @ w1[0 * E:1 * E, :]
              + pos[1:2, :] @ w1[2 * E:3 * E, :])        # (1, H) f32

    # Precomputed gather+fc1 table: rows [0,V)=concept@W1a, [V,V+A)=action@W1c,
    # [V+A,2V+A)=concept@W1b.  Zero-pad K to 256 (extra one-hot cols hit zeros).
    t_a = concept @ w1[0 * E:1 * E, :]                   # (V, H)
    t_act = action @ w1[1 * E:2 * E, :]                  # (A, H)
    t_b = concept @ w1[2 * E:3 * E, :]                   # (V, H)
    table = jnp.concatenate([t_a, t_act, t_b], axis=0)   # (2V+A, H)
    table_pad = jnp.zeros((K_PAD, HIDDEN_DIM), jnp.float32).at[:K_TABLE, :].set(table)

    # Zero-pad fc2 to a 128-wide lane-dense output; padded logits are exactly 0.
    w2 = params["fc2_w"].astype(jnp.float32)             # (H, V)
    b2 = params["fc2_b"].astype(jnp.float32)             # (1, V)
    w2_pad = jnp.zeros((HIDDEN_DIM, OUT_PAD), jnp.float32).at[:, :VOCAB_SIZE].set(w2)
    b2_pad = jnp.zeros((1, OUT_PAD), jnp.float32).at[:, :VOCAB_SIZE].set(b2)

    return {
        "table": table_pad.astype(jnp.bfloat16),         # (256, H) bf16 MXU operand
        "fc1_b": b1_eff,                                 # (1, H) f32
        "fc2_w": w2_pad.astype(jnp.bfloat16),            # (H, 128) bf16 MXU operand
        "fc2_b": b2_pad,                                 # (1, 128) f32
    }


def concept_action_forward(a, action, b, prepped):
    """Pallas-backed ConceptActionModel.forward.

    a/action/b: (B, 1) int32.  Returns the lane-dense padded logits (B, 128);
    columns [0, VOCAB_SIZE) are the concept logits, columns >= VOCAB_SIZE are 0.
    (Returning the padded slab avoids an extra XLA slice launch per forward.)
    """
    B = a.shape[0]
    vmem = pl.BlockSpec(memory_space=pltpu.MemorySpace.VMEM)
    return pl.pallas_call(
        _fused_kernel,
        out_shape=jax.ShapeDtypeStruct((B, OUT_PAD), jnp.float32),
        in_specs=[vmem] * 7,
        out_specs=vmem,
    )(a, action, b,
      prepped["table"], prepped["fc1_b"], prepped["fc2_w"], prepped["fc2_b"])


def init_params(key):
    """Deterministic synthetic parameter init (shapes match the PyTorch module)."""
    ks = jax.random.split(key, 8)
    scale = 0.1
    return {
        "concept_embed": scale * jax.random.normal(ks[0], (VOCAB_SIZE, EMBED_DIM), jnp.float32),
        "pos_embed":     scale * jax.random.normal(ks[1], (2, EMBED_DIM), jnp.float32),
        "action_embed":  scale * jax.random.normal(ks[2], (NUM_ACTIONS, EMBED_DIM), jnp.float32),
        # Stored directly as (in, out) so x @ W + b; real PyTorch nn.Linear
        # checkpoints are (out, in) and would need a transpose on load.
        "fc1_w": scale * jax.random.normal(ks[3], (EMBED_DIM * 3, HIDDEN_DIM), jnp.float32),
        "fc1_b": scale * jax.random.normal(ks[4], (1, HIDDEN_DIM), jnp.float32),
        "fc2_w": scale * jax.random.normal(ks[5], (HIDDEN_DIM, VOCAB_SIZE), jnp.float32),
        "fc2_b": scale * jax.random.normal(ks[6], (1, VOCAB_SIZE), jnp.float32),
        # TODO(synk): fc_action (propose_action head) is defined in __init__ but unused by
        # forward(); it is omitted from the kernel path.
    }


def reference_forward(a, action, b, params):
    """Pure-f32 JAX reference mirroring the PyTorch forward exactly."""
    a = a.ravel(); action = action.ravel(); b = b.ravel()
    pos0 = params["pos_embed"][0]
    pos1 = params["pos_embed"][1]
    emb_a = jnp.take(params["concept_embed"], a, axis=0) + pos0
    emb_b = jnp.take(params["concept_embed"], b, axis=0) + pos1
    emb_act = jnp.take(params["action_embed"], action, axis=0)
    x = jnp.concatenate([emb_a, emb_act, emb_b], axis=-1)
    h = jax.nn.relu(x @ params["fc1_w"] + params["fc1_b"])
    return h @ params["fc2_w"] + params["fc2_b"]


def matched_reference(a, action, b, prepped):
    """Reference that matches the kernel's precomputed-table / mixed-precision math."""
    a = a.ravel(); action = action.ravel(); b = b.ravel()
    T = prepped["table"].astype(jnp.float32)                   # (256, H)
    h = (T[a]
         + T[VOCAB_SIZE + action]
         + T[VOCAB_SIZE + NUM_ACTIONS + b]
         + prepped["fc1_b"])
    h = jnp.maximum(h, 0.0)
    out = (jnp.dot(h.astype(jnp.bfloat16), prepped["fc2_w"],
                   preferred_element_type=jnp.float32)
           + prepped["fc2_b"])
    return out[:, :VOCAB_SIZE]


if __name__ == "__main__":
    key = jax.random.PRNGKey(0)
    k_in, k_param = jax.random.split(key)
    ka, kact, kb = jax.random.split(k_in, 3)

    # ids as (B, 1) int32 -> VMEM vector operands for the in-kernel one-hot.
    a = jax.random.randint(ka, (BATCH, 1), 0, VOCAB_SIZE, dtype=jnp.int32)
    b = jax.random.randint(kb, (BATCH, 1), 0, VOCAB_SIZE, dtype=jnp.int32)
    action = jax.random.randint(kact, (BATCH, 1), 0, NUM_ACTIONS, dtype=jnp.int32)

    params = init_params(k_param)
    prepped = prepare_params(params)     # one-time prep (pos fold, table build, pad, bf16)

    logits_pad = concept_action_forward(a, action, b, prepped)
    logits_pad = jax.block_until_ready(logits_pad)

    # Test-only host-side slice to the real vocab width for comparison.
    logits = np.asarray(logits_pad)[:, :VOCAB_SIZE]

    # Padded lanes must be exactly zero (consumers index lanes 0..V-1).
    np.testing.assert_array_equal(np.asarray(logits_pad)[:, VOCAB_SIZE:], 0.0)

    # Tight check against a reference with identical table / mixed precision.
    matched = np.asarray(matched_reference(a, action, b, prepped))
    np.testing.assert_allclose(logits, matched, rtol=1e-4, atol=1e-4)

    # Loose check against the exact f32 PyTorch-equivalent forward (bf16 table /
    # weight quantization introduces small, bounded error).
    ref = np.asarray(reference_forward(a, action, b, params))
    np.testing.assert_allclose(logits, ref, rtol=2e-2, atol=2e-2)

    print("KERNEL_OK")
</pallas_src>

<mosaic_0001>
module attributes {stable_mosaic.version = 11 : i64} {
  func.func @_fused_kernel(%arg0: memref<8x1xi32, #tpu.memory_space<vmem>>, %arg1: memref<8x1xi32, #tpu.memory_space<vmem>>, %arg2: memref<8x1xi32, #tpu.memory_space<vmem>>, %arg3: memref<256x32xbf16, #tpu.memory_space<vmem>>, %arg4: memref<1x32xf32, #tpu.memory_space<vmem>>, %arg5: memref<32x128xbf16, #tpu.memory_space<vmem>>, %arg6: memref<1x128xf32, #tpu.memory_space<vmem>>, %arg7: memref<8x128xf32, #tpu.memory_space<vmem>>) attributes {dimension_semantics = [], scalar_prefetch = 0 : i64, scratch_operands = 0 : i64, tpu.core_type = #tpu.core_type<tc>} {
    %c0 = arith.constant 0 : index
    %c0_0 = arith.constant 0 : index
    %0 = vector.load %arg0[%c0, %c0_0] : memref<8x1xi32, #tpu.memory_space<vmem>>, vector<8x1xi32>
    %c0_i32 = arith.constant 0 : i32
    %c63_i32 = arith.constant 63 : i32
    %1 = vector.broadcast %c0_i32 : i32 to vector<8x1xi32>
    %2 = arith.maxsi %1, %0 : vector<8x1xi32>
    %3 = vector.broadcast %c63_i32 : i32 to vector<8x1xi32>
    %4 = arith.minsi %3, %2 : vector<8x1xi32>
    %c0_1 = arith.constant 0 : index
    %c0_2 = arith.constant 0 : index
    %5 = vector.load %arg1[%c0_1, %c0_2] : memref<8x1xi32, #tpu.memory_space<vmem>>, vector<8x1xi32>
    %c0_i32_3 = arith.constant 0 : i32
    %c3_i32 = arith.constant 3 : i32
    %6 = vector.broadcast %c0_i32_3 : i32 to vector<8x1xi32>
    %7 = arith.maxsi %6, %5 : vector<8x1xi32>
    %8 = vector.broadcast %c3_i32 : i32 to vector<8x1xi32>
    %9 = arith.minsi %8, %7 : vector<8x1xi32>
    %c64_i32 = arith.constant 64 : i32
    %10 = vector.broadcast %c64_i32 : i32 to vector<8x1xi32>
    %11 = arith.addi %9, %10 : vector<8x1xi32>
    %c0_4 = arith.constant 0 : index
    %c0_5 = arith.constant 0 : index
    %12 = vector.load %arg2[%c0_4, %c0_5] : memref<8x1xi32, #tpu.memory_space<vmem>>, vector<8x1xi32>
    %c0_i32_6 = arith.constant 0 : i32
    %c63_i32_7 = arith.constant 63 : i32
    %13 = vector.broadcast %c0_i32_6 : i32 to vector<8x1xi32>
    %14 = arith.maxsi %13, %12 : vector<8x1xi32>
    %15 = vector.broadcast %c63_i32_7 : i32 to vector<8x1xi32>
    %16 = arith.minsi %15, %14 : vector<8x1xi32>
    %c64_i32_8 = arith.constant 64 : i32
    %17 = vector.broadcast %c64_i32_8 : i32 to vector<8x1xi32>
    %18 = arith.addi %16, %17 : vector<8x1xi32>
    %c4_i32 = arith.constant 4 : i32
    %19 = vector.broadcast %c4_i32 : i32 to vector<8x1xi32>
    %20 = arith.addi %18, %19 : vector<8x1xi32>
    %21 = tpu.iota {dimensions = array<i32: 1>} : vector<8x256xi32>
    %22 = vector.broadcast %4 : vector<8x1xi32> to vector<8x256xi32>
    %23 = arith.cmpi eq, %21, %22 : vector<8x256xi32>
    %24 = vector.broadcast %11 : vector<8x1xi32> to vector<8x256xi32>
    %25 = arith.cmpi eq, %21, %24 : vector<8x256xi32>
    %26 = arith.ori %23, %25 : vector<8x256xi1>
    %27 = vector.broadcast %20 : vector<8x1xi32> to vector<8x256xi32>
    %28 = arith.cmpi eq, %21, %27 : vector<8x256xi32>
    %29 = arith.ori %26, %28 : vector<8x256xi1>
    %cst = arith.constant 1.000000e+00 : f32
    %cst_9 = arith.constant 0.000000e+00 : f32
    %30 = vector.broadcast %cst : f32 to vector<8x256xf32>
    %31 = vector.broadcast %cst_9 : f32 to vector<8x256xf32>
    %32 = arith.select %29, %30, %31 : vector<8x256xi1>, vector<8x256xf32>
    %33 = arith.truncf %32 : vector<8x256xf32> to vector<8x256xbf16>
    %c0_10 = arith.constant 0 : index
    %c0_11 = arith.constant 0 : index
    %34 = vector.load %arg3[%c0_10, %c0_11] : memref<256x32xbf16, #tpu.memory_space<vmem>>, vector<256x32xbf16>
    %cst_12 = arith.constant dense<0.000000e+00> : vector<8x32xf32>
    %35 = tpu.matmul %33, %34, %cst_12 {dimension_numbers = #tpu.dot_dimension_numbers<[1], [0], [0], [1], [0, 0, 1, 1], [], []>} : vector<8x256xbf16>, vector<256x32xbf16>, vector<8x32xf32> -> vector<8x32xf32>
    %c0_13 = arith.constant 0 : index
    %c0_14 = arith.constant 0 : index
    %36 = vector.load %arg4[%c0_13, %c0_14] : memref<1x32xf32, #tpu.memory_space<vmem>>, vector<1x32xf32>
    %37 = vector.broadcast %36 : vector<1x32xf32> to vector<8x32xf32>
    %38 = arith.addf %35, %37 : vector<8x32xf32>
    %cst_15 = arith.constant 0.000000e+00 : f32
    %39 = vector.broadcast %cst_15 : f32 to vector<8x32xf32>
    %40 = arith.maximumf %38, %39 : vector<8x32xf32>
    %41 = arith.truncf %40 : vector<8x32xf32> to vector<8x32xbf16>
    %c0_16 = arith.constant 0 : index
    %c0_17 = arith.constant 0 : index
    %42 = vector.load %arg5[%c0_16, %c0_17] : memref<32x128xbf16, #tpu.memory_space<vmem>>, vector<32x128xbf16>
    %cst_18 = arith.constant dense<0.000000e+00> : vector<8x128xf32>
    %43 = tpu.matmul %41, %42, %cst_18 {dimension_numbers = #tpu.dot_dimension_numbers<[1], [0], [0], [1], [0, 0, 1, 1], [], []>} : vector<8x32xbf16>, vector<32x128xbf16>, vector<8x128xf32> -> vector<8x128xf32>
    %c0_19 = arith.constant 0 : index
    %c0_20 = arith.constant 0 : index
    %44 = vector.load %arg6[%c0_19, %c0_20] : memref<1x128xf32, #tpu.memory_space<vmem>>, vector<1x128xf32>
    %45 = vector.broadcast %44 : vector<1x128xf32> to vector<8x128xf32>
    %46 = arith.addf %43, %45 : vector<8x128xf32>
    %c0_21 = arith.constant 0 : index
    %c0_22 = arith.constant 0 : index
    %47 = vector.load %arg7[%c0_21, %c0_22] : memref<8x128xf32, #tpu.memory_space<vmem>>, vector<8x128xf32>
    tpu.vector_store %arg7[%c0_21, %c0_22], %46 {strides = array<i32>} : memref<8x128xf32, #tpu.memory_space<vmem>>, vector<8x128xf32>,
    return
  }
}

</mosaic_0001>

<llo_original>
// kernel: tpu_custom_call.1
$region0: #{tpu_custom_call.1}
  #allocation0 [shape = 'u32[]', space=smem, size = 0x4, offset = 0x4, fixed_abs, tag = 'smem constant byte address 0x4 - core index']
  #allocation1 [shape = 'u32[144,128]{1,0:T(1,128)}', space=vmem, size = 0x12000, scoped, tag = 'internal scratch']
  %s0 = inlined_call_operand.vmem [shape: s32[8,1], index: 0, kind: input, shape index: {}]
  %s1 = inlined_call_operand.vmem [shape: s32[8,1], index: 1, kind: input, shape index: {}]
  %s2 = inlined_call_operand.vmem [shape: s32[8,1], index: 2, kind: input, shape index: {}]
  %s3 = inlined_call_operand.vmem [shape: bf16[256,32], index: 3, kind: input, shape index: {}]
  %s4 = inlined_call_operand.vmem [shape: f32[1,32], index: 4, kind: input, shape index: {}]
  %s5 = inlined_call_operand.vmem [shape: bf16[32,128], index: 5, kind: input, shape index: {}]
  %s6 = inlined_call_operand.vmem [shape: f32[1,128], index: 6, kind: input, shape index: {}]
  %s7 = inlined_call_operand.hbm [shape: f32[8,128], index: 7, kind: output, shape index: {}]
  %s8 = sld [smem:[#allocation0]]
  $region38: #{tpu_custom_call.1} parent=0
    _
  %s10 = ssub.s32 1, %s8
  %s11 = scalar_select 0, %s10, %s8
  $region1: #{tpu_custom_call.1} parent=0
    #allocation2 [shape = 'u8[4096]{0}', space=vmem, size = 0x1000, scoped, tag = 'output window, operand 0, single buffered']
    #allocation3 [shape = 's32[1]{0}', space=sflag, size = 0x4, scoped, tag = 'scoped memory for tpu_custom_call.1']
    %12 = vsyncpa [#allocation3], 0
    // Predicated region
    $region2: #{tpu_custom_call.1} parent=1 // pred_check
      _
    $region3: #{tpu_custom_call.1} parent=1 // pred_check_branch
      %14 = sbr.rel (0) target = $region5
    $region4: #{tpu_custom_call.1} parent=1 // pred_region
      _
    $region5: #{tpu_custom_call.1} parent=1 // pred_fallthru
      _
    // Predicated region
    $region6: #{tpu_custom_call.1} parent=1 // pred_check
      _
    $region7: #{tpu_custom_call.1} parent=1 // pred_check_branch
      %16 = sbr.rel (0) target = $region9
    $region8: #{tpu_custom_call.1} parent=1 // pred_region
      _
    $region9: #{tpu_custom_call.1} parent=1 // pred_fallthru
      _
    // Predicated region
    $region10: #{tpu_custom_call.1} parent=1 // pred_check
      _
    $region11: #{tpu_custom_call.1} parent=1 // pred_check_branch
      %18 = sbr.rel (0) target = $region13
    $region12: #{tpu_custom_call.1} parent=1 // pred_region
      _
    $region13: #{tpu_custom_call.1} parent=1 // pred_fallthru
      _
    // Predicated region
    $region14: #{tpu_custom_call.1} parent=1 // pred_check
      _
    $region15: #{tpu_custom_call.1} parent=1 // pred_check_branch
      %20 = sbr.rel (0) target = $region17
    $region16: #{tpu_custom_call.1} parent=1 // pred_region
      _
    $region17: #{tpu_custom_call.1} parent=1 // pred_fallthru
      _
    // Predicated region
    $region18: #{tpu_custom_call.1} parent=1 // pred_check
      _
    $region19: #{tpu_custom_call.1} parent=1 // pred_check_branch
      %22 = sbr.rel (0) target = $region21
    $region20: #{tpu_custom_call.1} parent=1 // pred_region
      _
    $region21: #{tpu_custom_call.1} parent=1 // pred_fallthru
      _
    // Predicated region
    $region22: #{tpu_custom_call.1} parent=1 // pred_check
      _
    $region23: #{tpu_custom_call.1} parent=1 // pred_check_branch
      %24 = sbr.rel (0) target = $region25
    $region24: #{tpu_custom_call.1} parent=1 // pred_region
      _
    $region25: #{tpu_custom_call.1} parent=1 // pred_fallthru
      _
    // Predicated region
    $region26: #{tpu_custom_call.1} parent=1 // pred_check
      _
    $region27: #{tpu_custom_call.1} parent=1 // pred_check_branch
      %26 = sbr.rel (0) target = $region29
    $region28: #{tpu_custom_call.1} parent=1 // pred_region
      _
    $region29: #{tpu_custom_call.1} parent=1 // pred_fallthru
      _
    %v28 = vld [vmem:[%s0] sm:$0xff]
    %vm29 = vcmp.gt.s32.totalorder %v28, 0
    %v30 = vsel %vm29, %v28, 0
    %vm31 = vcmp.lt.s32.totalorder %v30, 63
    %v32 = vsel %vm31, %v30, 63
    %v33 = vld [vmem:[%s1] sm:$0xff]
    %vm34 = vcmp.gt.s32.totalorder %v33, 0
    %v35 = vsel %vm34, %v33, 0
    %vm36 = vcmp.lt.s32.totalorder %v35, 3
    %v37 = vsel %vm36, %v35, 3
    %v38 = vadd.s32 %v37, 64
    %v39 = vld [vmem:[%s2] sm:$0xff]
    %vm40 = vcmp.gt.s32.totalorder %v39, 0
    %v41 = vsel %vm40, %v39, 0
    %vm42 = vcmp.lt.s32.totalorder %v41, 63
    %v43 = vsel %vm42, %v41, 63
    %v44 = vadd.s32 %v43, 64
    %v45 = vadd.s32 %v44, 4
    %v46 = vlaneseq
    %v47 = vand.u32 %v46, 127
    %v48 = vadd.s32 %v47, 128
    %49 = vset.pattern.permute.xlu0 0
    %50 = vperm.xlu0 %49, %v32
    %v51 = vpop.permute.xlu0 %50
    %vm52 = vcmp.eq.s32.totalorder %v47, %v51
    %vm53 = vcmp.eq.s32.totalorder %v48, %v51
    %54 = vset.pattern.permute.xlu0 0
    %55 = vperm.xlu0 %54, %v38
    %v56 = vpop.permute.xlu0 %55
    %vm57 = vcmp.eq.s32.totalorder %v47, %v56
    %vm58 = vcmp.eq.s32.totalorder %v48, %v56
    %vm59 = vmor %vm52, %vm57
    %vm60 = vmor %vm53, %vm58
    %61 = vset.pattern.permute.xlu0 0
    %62 = vperm.xlu0 %61, %v45
    %v63 = vpop.permute.xlu0 %62
    %vm64 = vcmp.eq.s32.totalorder %v47, %v63
    %vm65 = vcmp.eq.s32.totalorder %v48, %v63
    %vm66 = vmor %vm59, %vm64
    %vm67 = vmor %vm60, %vm65
    %v68 = vsel %vm66, 1.0, 0.0
    %v69 = vsel %vm67, 1.0, 0.0
    %v70 = vpack.c.bf16 %v68, %v68
    %v71 = vpack.c.bf16 %v69, %v69
    %v72 = vld [vmem:[%s3] sm:$0xf]
    %v73 = vld [vmem:[%s3 + $0x4] sm:$0xf]
    %v74 = vld [vmem:[%s3 + $0x8] sm:$0xf]
    %v75 = vld [vmem:[%s3 + $0xc] sm:$0xf]
    %v76 = vld [vmem:[%s3 + $0x10] sm:$0xf]
    %v77 = vld [vmem:[%s3 + $0x14] sm:$0xf]
    %v78 = vld [vmem:[%s3 + $0x18] sm:$0xf]
    %v79 = vld [vmem:[%s3 + $0x1c] sm:$0xf]
    %v80 = vld [vmem:[%s3 + $0x20] sm:$0xf]
    %v81 = vld [vmem:[%s3 + $0x24] sm:$0xf]
    %v82 = vld [vmem:[%s3 + $0x28] sm:$0xf]
    %v83 = vld [vmem:[%s3 + $0x2c] sm:$0xf]
    %v84 = vld [vmem:[%s3 + $0x30] sm:$0xf]
    %v85 = vld [vmem:[%s3 + $0x34] sm:$0xf]
    %v86 = vld [vmem:[%s3 + $0x38] sm:$0xf]
    %v87 = vld [vmem:[%s3 + $0x3c] sm:$0xf]
    %v88 = vld [vmem:[%s3 + $0x40] sm:$0xf]
    %v89 = vld [vmem:[%s3 + $0x44] sm:$0xf]
    %v90 = vld [vmem:[%s3 + $0x48] sm:$0xf]
    %v91 = vld [vmem:[%s3 + $0x4c] sm:$0xf]
    %v92 = vld [vmem:[%s3 + $0x50] sm:$0xf]
    %v93 = vld [vmem:[%s3 + $0x54] sm:$0xf]
    %v94 = vld [vmem:[%s3 + $0x58] sm:$0xf]
    %v95 = vld [vmem:[%s3 + $0x5c] sm:$0xf]
    %v96 = vld [vmem:[%s3 + $0x60] sm:$0xf]
    %v97 = vld [vmem:[%s3 + $0x64] sm:$0xf]
    %v98 = vld [vmem:[%s3 + $0x68] sm:$0xf]
    %v99 = vld [vmem:[%s3 + $0x6c] sm:$0xf]
    %v100 = vld [vmem:[%s3 + $0x70] sm:$0xf]
    %v101 = vld [vmem:[%s3 + $0x74] sm:$0xf]
    %v102 = vld [vmem:[%s3 + $0x78] sm:$0xf]
    %v103 = vld [vmem:[%s3 + $0x7c] sm:$0xf]
    %v104 = vld [vmem:[%s4] sm:$0x1]
    %v106 = vlaneseq
    %v107 = vshrl.u32 %v106, 7
    %v108 = vsub.s32 0, %v107
    %v109 = vrot.slane %v104, %v108
    %v143 = vunpack.c.l.b16 %v72
    %v144 = vunpack.c.l.b16 %v73
    %v145 = vunpack.c.l.b16 %v74
    %v146 = vunpack.c.l.b16 %v75
    %v147 = vunpack.c.l.b16 %v76
    %v148 = vunpack.c.l.b16 %v77
    %v149 = vunpack.c.l.b16 %v78
    %v150 = vunpack.c.l.b16 %v79
    %v151 = vunpack.c.l.b16 %v80
    %v152 = vunpack.c.l.b16 %v81
    %v153 = vunpack.c.l.b16 %v82
    %v154 = vunpack.c.l.b16 %v83
    %v155 = vunpack.c.l.b16 %v84
    %v156 = vunpack.c.l.b16 %v85
    %v157 = vunpack.c.l.b16 %v86
    %v158 = vunpack.c.l.b16 %v87
    %v159 = vunpack.c.l.b16 %v88
    %v160 = vunpack.c.l.b16 %v89
    %v161 = vunpack.c.l.b16 %v90
    %v162 = vunpack.c.l.b16 %v91
    %v163 = vunpack.c.l.b16 %v92
    %v164 = vunpack.c.l.b16 %v93
    %v165 = vunpack.c.l.b16 %v94
    %v166 = vunpack.c.l.b16 %v95
    %v167 = vunpack.c.l.b16 %v96
    %v168 = vunpack.c.l.b16 %v97
    %v169 = vunpack.c.l.b16 %v98
    %v170 = vunpack.c.l.b16 %v99
    %v171 = vunpack.c.l.b16 %v100
    %v172 = vunpack.c.l.b16 %v101
    %v173 = vunpack.c.l.b16 %v102
    %v174 = vunpack.c.l.b16 %v103
    %v175 = vpack.c.b16 %v144, %v143
    %v176 = vpack.c.b16 %v146, %v145
    %v177 = vpack.c.b16 %v148, %v147
    %v178 = vpack.c.b16 %v150, %v149
    %v179 = vpack.c.b16 %v152, %v151
    %v180 = vpack.c.b16 %v154, %v153
    %v181 = vpack.c.b16 %v156, %v155
    %v182 = vpack.c.b16 %v158, %v157
    %v183 = vpack.c.b16 %v160, %v159
    %v184 = vpack.c.b16 %v162, %v161
    %v185 = vpack.c.b16 %v164, %v163
    %v186 = vpack.c.b16 %v166, %v165
    %v187 = vpack.c.b16 %v168, %v167
    %v188 = vpack.c.b16 %v170, %v169
    %v189 = vpack.c.b16 %v172, %v171
    %v190 = vpack.c.b16 %v174, %v173
    %207 = vmatprep.subr.bf16.mxu0 0
    %208 = vmatpush1.bf16.msra.mxu0 %v175
    %209 = vmatprep.subr.bf16.mxu0 0
    %210 = vmatpush1.bf16.msra.mxu0 %v176
    %211 = vmatprep.subr.bf16.mxu0 0
    %212 = vmatpush1.bf16.msra.mxu0 %v177
    %213 = vmatprep.subr.bf16.mxu0 0
    %214 = vmatpush1.bf16.msra.mxu0 %v178
    %215 = vmatprep.subr.bf16.mxu0 0
    %216 = vmatpush1.bf16.msra.mxu0 %v179
    %217 = vmatprep.subr.bf16.mxu0 0
    %218 = vmatpush1.bf16.msra.mxu0 %v180
    %219 = vmatprep.subr.bf16.mxu0 0
    %220 = vmatpush1.bf16.msra.mxu0 %v181
    %221 = vmatprep.subr.bf16.mxu0 0
    %222 = vmatpush1.bf16.msra.mxu0 %v182
    %223 = vmatprep.subr.bf16.mxu0 0
    %224 = vmatpush1.bf16.msra.mxu0 %v183
    %225 = vmatprep.subr.bf16.mxu0 0
    %226 = vmatpush1.bf16.msra.mxu0 %v184
    %227 = vmatprep.subr.bf16.mxu0 0
    %228 = vmatpush1.bf16.msra.mxu0 %v185
    %229 = vmatprep.subr.bf16.mxu0 0
    %230 = vmatpush1.bf16.msra.mxu0 %v186
    %231 = vmatprep.subr.bf16.mxu0 0
    %232 = vmatpush1.bf16.msra.mxu0 %v187
    %233 = vmatprep.subr.bf16.mxu0 0
    %234 = vmatpush1.bf16.msra.mxu0 %v188
    %235 = vmatprep.subr.bf16.mxu0 0
    %236 = vmatpush1.bf16.msra.mxu0 %v189
    %237 = vmatprep.subr.bf16.mxu0 0
    %238 = vmatpush1.bf16.msra.mxu0 %v190
    %239 = vmatprep.mubr.bf16.mxu0 %v71
    %240 = vmatmul.mubr.bf16.gmra.mrb[0].mxu0 %v70
    %v241 = vpop.f32.mrb[0].mxu0
    %v242 = vadd.f32 %v109, %v241
    %v243 = vpop.f32.mrb[0].mxu0
    %v244 = vpop.f32.mrb[0].mxu0
    %v245 = vpop.f32.mrb[0].mxu0
    %246 = vdwg.mxu0
    %v247 = vmax.f32 %v242, 0.0
    %v248 = vpack.c.bf16 %v247, %v247
    %v249 = vld [vmem:[%s5] sm:$0xf]
    %v250 = vld [vmem:[%s5 + $0x4] sm:$0xf]
    %v251 = vld [vmem:[%s5 + $0x8] sm:$0xf]
    %v252 = vld [vmem:[%s5 + $0xc] sm:$0xf]
    %v253 = vld [vmem:[%s6] sm:$0x1]
    %v255 = vlaneseq
    %v256 = vshrl.u32 %v255, 7
    %v257 = vsub.s32 0, %v256
    %v258 = vrot.slane %v253, %v257
    %v264 = vunpack.c.l.b16 %v249
    %v265 = vunpack.c.l.b16 %v250
    %v266 = vunpack.c.l.b16 %v251
    %v267 = vunpack.c.l.b16 %v252
    %v268 = vpack.c.b16 %v265, %v264
    %v269 = vpack.c.b16 %v267, %v266
    %vm272 = vcmask 261120
    %v274 = vsel %vm272, %v248, 0
    %276 = vmatprep.subr.bf16.mxu0 0
    %277 = vmatpush1.bf16.msra.mxu0 %v268
    %278 = vmatprep.subr.bf16.mxu0 0
    %279 = vmatpush1.bf16.msra.mxu0 %v269
    %280 = vmatprep.subr.bf16.mxu0 0
    %281 = vmatpush1.bf16.msra.mxu0 0
    %282 = vmatprep.subr.bf16.mxu0 0
    %283 = vmatpush1.bf16.msra.mxu0 0
    %284 = vmatprep.subr.bf16.mxu0 0
    %285 = vmatpush1.bf16.msra.mxu0 0
    %286 = vmatprep.subr.bf16.mxu0 0
    %287 = vmatpush1.bf16.msra.mxu0 0
    %288 = vmatprep.subr.bf16.mxu0 0
    %289 = vmatpush1.bf16.msra.mxu0 0
    %290 = vmatprep.subr.bf16.mxu0 0
    %291 = vmatpush1.bf16.msra.mxu0 0
    %292 = vmatprep.subr.bf16.mxu0 0
    %293 = vmatpush1.bf16.msra.mxu0 0
    %294 = vmatprep.subr.bf16.mxu0 0
    %295 = vmatpush1.bf16.msra.mxu0 0
    %296 = vmatprep.subr.bf16.mxu0 0
    %297 = vmatpush1.bf16.msra.mxu0 0
    %298 = vmatprep.subr.bf16.mxu0 0
    %299 = vmatpush1.bf16.msra.mxu0 0
    %300 = vmatprep.subr.bf16.mxu0 0
    %301 = vmatpush1.bf16.msra.mxu0 0
    %302 = vmatprep.subr.bf16.mxu0 0
    %303 = vmatpush1.bf16.msra.mxu0 0
    %304 = vmatprep.subr.bf16.mxu0 0
    %305 = vmatpush1.bf16.msra.mxu0 0
    %306 = vmatprep.subr.bf16.mxu0 0
    %307 = vmatpush1.bf16.msra.mxu0 0
    %308 = vmatprep.mubr.bf16.mxu0 0
    %309 = vmatmul.mubr.bf16.gmra.mrb[0].mxu0 %v274
    %v310 = vpop.f32.mrb[0].mxu0
    %v311 = vadd.f32 %v258, %v310
    %v312 = vpop.f32.mrb[0].mxu0
    %v313 = vpop.f32.mrb[0].mxu0
    %v314 = vpop.f32.mrb[0].mxu0
    %315 = vdwg.mxu0
    %316 = vst [vmem:[#allocation2] sm:$0xff] %v311
    // Predicated region
    $region30: #{tpu_custom_call.1} parent=1 // pred_check
      _
    $region31: #{tpu_custom_call.1} parent=1 // pred_check_branch
      %318 = sbr.rel (0) target = $region33
    $region32: #{tpu_custom_call.1} parent=1 // pred_region
      %s320 = ssub.s32 128, 128
      %321 = vsyncadd [#allocation3], %s320
      %s323 = sshll.u32 [#allocation2], 4
      %s324 = int_to_ptr.vmem [resolvable:$true] %s323
      %326 = dma.vmem_to_hbm [thread:$0]  %s324, 128, %s7, [#allocation3]
    $region33: #{tpu_custom_call.1} parent=1 // pred_fallthru
      _
    // Predicated region
    $region34: #{tpu_custom_call.1} parent=1 // pred_check
      _
    $region35: #{tpu_custom_call.1} parent=1 // pred_check_branch
      %328 = sbr.rel (0) target = $region37
    $region36: #{tpu_custom_call.1} parent=1 // pred_region
      %329 = dma.done [#allocation3], 128
    $region37: #{tpu_custom_call.1} parent=1 // pred_fallthru
      _
    %330 = vsyncpa [#allocation3], 1

</llo_original>
